<compile_context>
chip_gen: v7x
topology: tpu7x:2x2x1
jax: 0.10.0
libtpu: 0.0.40
codegen_flags: <defaults>
</compile_context>

<pallas_src>
import jax
import jax.numpy as jnp
from jax.experimental import pallas as pl
from jax.experimental.pallas import tpu as pltpu


def _round_up(n, m):
    return ((n + m - 1) // m) * m


def mlp_kernel(x_ref, w1_ref, b1_ref, w2_ref, b2_ref, w3_ref, b3_ref, o_ref):
    x = x_ref[...]                                   # (TB, 2)

    # fc1 + relu — K=2 contraction done on the VPU (two broadcast FMAs),
    # avoiding a near-empty MXU fill.
    h1 = x[:, 0:1] * w1_ref[0:1, :] + x[:, 1:2] * w1_ref[1:2, :] + b1_ref[...]
    h1 = jnp.maximum(h1, 0.0)                        # (TB, 64)

    # fc2 + relu (MXU)
    h2 = jnp.dot(h1, w2_ref[...], preferred_element_type=jnp.float32) + b2_ref[...]
    h2 = jnp.maximum(h2, 0.0)                        # (TB, 64)

    # fc3 (MXU) — narrow 3-wide output stored directly (masked vst is cheap;
    # the store slot / writeback DMA are nowhere near saturation).
    out = jnp.dot(h2, w3_ref[...], preferred_element_type=jnp.float32) + b3_ref[...]
    o_ref[...] = out.astype(o_ref.dtype)             # (TB, 3)


def mlp_forward(x, w1, b1, w2, b2, w3, b3, *, tb=4096):
    """x: (B, 2). Weights (in,out), biases (1,out). Returns (B, 3) float32."""
    B, in_dim = x.shape
    hidden = w2.shape[0]
    out_dim = w3.shape[1]

    # Batch tile: forced multiple of 8 (sublane constraint), no larger than the
    # (8-rounded) batch.
    B_ceil8 = _round_up(max(B, 1), 8)
    TB = _round_up(min(max(tb, 8), B_ceil8), 8)
    # v7x: keep >= 2 grid steps when the batch is big enough to split, so the
    # "parallel" batch axis can be sharded across both TensorCores.
    if (B_ceil8 // TB) < 2 and B_ceil8 >= 16:
        TB = _round_up(-(-B_ceil8 // 2), 8)

    B_pad = _round_up(B, TB)
    if B_pad != B:
        # Only hit when B % TB != 0; pads just the tail rows' worth of zeros.
        x = jnp.pad(x, ((0, B_pad - B), (0, 0)))
    grid = (B_pad // TB,)

    # Weights/biases: constant index_map -> VMEM-resident, no per-step re-DMA.
    const = lambda a: pl.BlockSpec(a.shape, lambda i: (0,) * a.ndim)

    weight_bytes = 4 * (w1.size + b1.size + w2.size + b2.size + w3.size + b3.size)
    cost = pl.CostEstimate(
        flops=2 * B_pad * (in_dim * hidden + hidden * hidden + hidden * out_dim),
        transcendentals=0,
        bytes_accessed=4 * B_pad * (in_dim + out_dim) + weight_bytes,
    )

    out = pl.pallas_call(
        mlp_kernel,
        out_shape=jax.ShapeDtypeStruct((B_pad, out_dim), jnp.float32),
        grid=grid,
        in_specs=[
            pl.BlockSpec((TB, in_dim), lambda i: (i, 0)),  # x: tiled over batch
            const(w1), const(b1),
            const(w2), const(b2),
            const(w3), const(b3),
        ],
        out_specs=pl.BlockSpec((TB, out_dim), lambda i: (i, 0)),
        compiler_params=pltpu.CompilerParams(
            dimension_semantics=("parallel",),
            vmem_limit_bytes=32 * 1024 * 1024,  # v5e default is 16 MiB
        ),
        cost_estimate=cost,
    )(x, w1, b1, w2, b2, w3, b3)

    return out if B_pad == B else out[:B]


def init_linear(key, in_dim, out_dim):
    # Deterministic init mimicking PyTorch's uniform(-1/sqrt(fan_in), 1/sqrt(fan_in)).
    kw, kb = jax.random.split(key)
    bound = 1.0 / jnp.sqrt(jnp.float32(in_dim))
    w = jax.random.uniform(kw, (in_dim, out_dim), jnp.float32, -bound, bound)
    b = jax.random.uniform(kb, (1, out_dim), jnp.float32, -bound, bound)
    return w, b


if __name__ == "__main__":
    key = jax.random.PRNGKey(0)
    k_x, k1, k2, k3 = jax.random.split(key, 4)

    batch = 8
    x = jax.random.normal(k_x, (batch, 2), jnp.float32)

    w1, b1 = init_linear(k1, 2, 64)
    w2, b2 = init_linear(k2, 64, 64)
    w3, b3 = init_linear(k3, 64, 3)

    out = mlp_forward(x, w1, b1, w2, b2, w3, b3)
    out = jax.block_until_ready(out)

    # Pure-JAX reference check.
    ref = jnp.maximum(x @ w1 + b1, 0.0)
    ref = jnp.maximum(ref @ w2 + b2, 0.0)
    ref = ref @ w3 + b3
    assert out.shape == (batch, 3)
    assert jnp.allclose(out, ref, atol=1e-5, rtol=1e-5)

    print("KERNEL_OK")
</pallas_src>

<mosaic_0001>
module attributes {stable_mosaic.version = 11 : i64} {
  func.func @mlp_kernel(%arg0: i32, %arg1: memref<8x2xf32, #tpu.memory_space<vmem>>, %arg2: memref<2x64xf32, #tpu.memory_space<vmem>>, %arg3: memref<1x64xf32, #tpu.memory_space<vmem>>, %arg4: memref<64x64xf32, #tpu.memory_space<vmem>>, %arg5: memref<1x64xf32, #tpu.memory_space<vmem>>, %arg6: memref<64x3xf32, #tpu.memory_space<vmem>>, %arg7: memref<1x3xf32, #tpu.memory_space<vmem>>, %arg8: memref<8x3xf32, #tpu.memory_space<vmem>>) attributes {dimension_semantics = [#tpu.dimension_semantics<parallel>], iteration_bounds = array<i64: 1>, scalar_prefetch = 0 : i64, scratch_operands = 0 : i64, tpu.core_type = #tpu.core_type<tc>, window_params = [{transform_indices = @transform_0, window_bounds = array<i64: 8, 2>}, {pipeline_mode = #tpu.pipeline_mode<synchronous>, transform_indices = @transform_1, window_bounds = array<i64: 2, 64>}, {pipeline_mode = #tpu.pipeline_mode<synchronous>, transform_indices = @transform_2, window_bounds = array<i64: 1, 64>}, {pipeline_mode = #tpu.pipeline_mode<synchronous>, transform_indices = @transform_3, window_bounds = array<i64: 64, 64>}, {pipeline_mode = #tpu.pipeline_mode<synchronous>, transform_indices = @transform_4, window_bounds = array<i64: 1, 64>}, {pipeline_mode = #tpu.pipeline_mode<synchronous>, transform_indices = @transform_5, window_bounds = array<i64: 64, 3>}, {pipeline_mode = #tpu.pipeline_mode<synchronous>, transform_indices = @transform_6, window_bounds = array<i64: 1, 3>}, {transform_indices = @transform_7, window_bounds = array<i64: 8, 3>}]} {
    %c0 = arith.constant 0 : index
    %c0_0 = arith.constant 0 : index
    %0 = vector.load %arg1[%c0, %c0_0] : memref<8x2xf32, #tpu.memory_space<vmem>>, vector<8x2xf32>
    %1 = vector.extract_strided_slice %0 {offsets = [0, 0], sizes = [8, 1], strides = [1, 1]} : vector<8x2xf32> to vector<8x1xf32>
    %c0_1 = arith.constant 0 : index
    %c0_2 = arith.constant 0 : index
    %2 = vector.load %arg2[%c0_1, %c0_2] : memref<2x64xf32, #tpu.memory_space<vmem>>, vector<1x64xf32>
    %3 = vector.broadcast %1 : vector<8x1xf32> to vector<8x64xf32>
    %4 = vector.broadcast %2 : vector<1x64xf32> to vector<8x64xf32>
    %5 = arith.mulf %3, %4 : vector<8x64xf32>
    %6 = vector.extract_strided_slice %0 {offsets = [0, 1], sizes = [8, 1], strides = [1, 1]} : vector<8x2xf32> to vector<8x1xf32>
    %c1 = arith.constant 1 : index
    %c0_3 = arith.constant 0 : index
    %7 = vector.load %arg2[%c1, %c0_3] : memref<2x64xf32, #tpu.memory_space<vmem>>, vector<1x64xf32>
    %8 = vector.broadcast %6 : vector<8x1xf32> to vector<8x64xf32>
    %9 = vector.broadcast %7 : vector<1x64xf32> to vector<8x64xf32>
    %10 = arith.mulf %8, %9 : vector<8x64xf32>
    %11 = arith.addf %5, %10 : vector<8x64xf32>
    %c0_4 = arith.constant 0 : index
    %c0_5 = arith.constant 0 : index
    %12 = vector.load %arg3[%c0_4, %c0_5] : memref<1x64xf32, #tpu.memory_space<vmem>>, vector<1x64xf32>
    %13 = vector.broadcast %12 : vector<1x64xf32> to vector<8x64xf32>
    %14 = arith.addf %11, %13 : vector<8x64xf32>
    %cst = arith.constant 0.000000e+00 : f32
    %15 = vector.broadcast %cst : f32 to vector<8x64xf32>
    %16 = arith.maximumf %14, %15 : vector<8x64xf32>
    %c0_6 = arith.constant 0 : index
    %c0_7 = arith.constant 0 : index
    %17 = vector.load %arg4[%c0_6, %c0_7] : memref<64x64xf32, #tpu.memory_space<vmem>>, vector<64x64xf32>
    %cst_8 = arith.constant dense<0.000000e+00> : vector<8x64xf32>
    %18 = tpu.matmul %16, %17, %cst_8 {dimension_numbers = #tpu.dot_dimension_numbers<[1], [0], [0], [1], [0, 0, 1, 1], [], []>} : vector<8x64xf32>, vector<64x64xf32>, vector<8x64xf32> -> vector<8x64xf32>
    %c0_9 = arith.constant 0 : index
    %c0_10 = arith.constant 0 : index
    %19 = vector.load %arg5[%c0_9, %c0_10] : memref<1x64xf32, #tpu.memory_space<vmem>>, vector<1x64xf32>
    %20 = vector.broadcast %19 : vector<1x64xf32> to vector<8x64xf32>
    %21 = arith.addf %18, %20 : vector<8x64xf32>
    %cst_11 = arith.constant 0.000000e+00 : f32
    %22 = vector.broadcast %cst_11 : f32 to vector<8x64xf32>
    %23 = arith.maximumf %21, %22 : vector<8x64xf32>
    %c0_12 = arith.constant 0 : index
    %c0_13 = arith.constant 0 : index
    %24 = vector.load %arg6[%c0_12, %c0_13] : memref<64x3xf32, #tpu.memory_space<vmem>>, vector<64x3xf32>
    %cst_14 = arith.constant dense<0.000000e+00> : vector<8x3xf32>
    %25 = tpu.matmul %23, %24, %cst_14 {dimension_numbers = #tpu.dot_dimension_numbers<[1], [0], [0], [1], [0, 0, 1, 1], [], []>} : vector<8x64xf32>, vector<64x3xf32>, vector<8x3xf32> -> vector<8x3xf32>
    %c0_15 = arith.constant 0 : index
    %c0_16 = arith.constant 0 : index
    %26 = vector.load %arg7[%c0_15, %c0_16] : memref<1x3xf32, #tpu.memory_space<vmem>>, vector<1x3xf32>
    %27 = vector.broadcast %26 : vector<1x3xf32> to vector<8x3xf32>
    %28 = arith.addf %25, %27 : vector<8x3xf32>
    %c0_17 = arith.constant 0 : index
    %c0_18 = arith.constant 0 : index
    %29 = vector.load %arg8[%c0_17, %c0_18] : memref<8x3xf32, #tpu.memory_space<vmem>>, vector<8x3xf32>
    tpu.vector_store %arg8[%c0_17, %c0_18], %28 {strides = array<i32>} : memref<8x3xf32, #tpu.memory_space<vmem>>, vector<8x3xf32>,
    return
  }
  func.func @transform_0(%arg0: i32) -> (i32, i32) {
    %c0_i32 = arith.constant 0 : i32
    %c0_i32_0 = arith.constant 0 : i32
    return %arg0, %c0_i32 : i32, i32
  }
  func.func @transform_1(%arg0: i32) -> (i32, i32) {
    %c0_i32 = arith.constant 0 : i32
    %c0_i32_0 = arith.constant 0 : i32
    %c0_i32_1 = arith.constant 0 : i32
    return %c0_i32, %c0_i32_0 : i32, i32
  }
  func.func @transform_2(%arg0: i32) -> (i32, i32) {
    %c0_i32 = arith.constant 0 : i32
    %c0_i32_0 = arith.constant 0 : i32
    %c0_i32_1 = arith.constant 0 : i32
    return %c0_i32, %c0_i32_0 : i32, i32
  }
  func.func @transform_3(%arg0: i32) -> (i32, i32) {
    %c0_i32 = arith.constant 0 : i32
    %c0_i32_0 = arith.constant 0 : i32
    %c0_i32_1 = arith.constant 0 : i32
    return %c0_i32, %c0_i32_0 : i32, i32
  }
  func.func @transform_4(%arg0: i32) -> (i32, i32) {
    %c0_i32 = arith.constant 0 : i32
    %c0_i32_0 = arith.constant 0 : i32
    %c0_i32_1 = arith.constant 0 : i32
    return %c0_i32, %c0_i32_0 : i32, i32
  }
  func.func @transform_5(%arg0: i32) -> (i32, i32) {
    %c0_i32 = arith.constant 0 : i32
    %c0_i32_0 = arith.constant 0 : i32
    %c0_i32_1 = arith.constant 0 : i32
    return %c0_i32, %c0_i32_0 : i32, i32
  }
  func.func @transform_6(%arg0: i32) -> (i32, i32) {
    %c0_i32 = arith.constant 0 : i32
    %c0_i32_0 = arith.constant 0 : i32
    %c0_i32_1 = arith.constant 0 : i32
    return %c0_i32, %c0_i32_0 : i32, i32
  }
  func.func @transform_7(%arg0: i32) -> (i32, i32) {
    %c0_i32 = arith.constant 0 : i32
    %c0_i32_0 = arith.constant 0 : i32
    return %arg0, %c0_i32 : i32, i32
  }
}

</mosaic_0001>

<llo_original>
// kernel: tpu_custom_call.1
$region0: #{tpu_custom_call.1}
  #allocation0 [shape = 'u32[]', space=smem, size = 0x4, offset = 0x4, fixed_abs, tag = 'smem constant byte address 0x4 - core index']
  #allocation1 [shape = 'u32[144,128]{1,0:T(1,128)}', space=vmem, size = 0x12000, scoped, tag = 'internal scratch']
  %s0 = inlined_call_operand.vmem [shape: f32[8,2], index: 0, kind: input, shape index: {}]
  %s1 = inlined_call_operand.vmem [shape: f32[2,64], index: 1, kind: input, shape index: {}]
  %s2 = inlined_call_operand.vmem [shape: f32[1,64], index: 2, kind: input, shape index: {}]
  %s3 = inlined_call_operand.vmem [shape: f32[64,64], index: 3, kind: input, shape index: {}]
  %s4 = inlined_call_operand.vmem [shape: f32[1,64], index: 4, kind: input, shape index: {}]
  %s5 = inlined_call_operand.vmem [shape: f32[64,3], index: 5, kind: input, shape index: {}]
  %s6 = inlined_call_operand.vmem [shape: f32[1,3], index: 6, kind: input, shape index: {}]
  %s7 = inlined_call_operand.vmem [shape: f32[8,3], index: 7, kind: output, shape index: {}]
  %s8 = sld [smem:[#allocation0]]
  $region38: #{tpu_custom_call.1} parent=0
    _
  %s10 = ssub.s32 1, %s8
  %s11 = scalar_select 0, %s10, %s8
  // Predicated region
  $region2: #{tpu_custom_call.1} parent=0 // pred_check
    _
  $region3: #{tpu_custom_call.1} parent=0 // pred_check_branch
    %13 = sbr.rel (0) target = $region5
  $region4: #{tpu_custom_call.1} parent=0 // pred_region
    _
  $region5: #{tpu_custom_call.1} parent=0 // pred_fallthru
    _
  // Predicated region
  $region6: #{tpu_custom_call.1} parent=0 // pred_check
    _
  $region7: #{tpu_custom_call.1} parent=0 // pred_check_branch
    %15 = sbr.rel (0) target = $region9
  $region8: #{tpu_custom_call.1} parent=0 // pred_region
    _
  $region9: #{tpu_custom_call.1} parent=0 // pred_fallthru
    _
  // Predicated region
  $region10: #{tpu_custom_call.1} parent=0 // pred_check
    _
  $region11: #{tpu_custom_call.1} parent=0 // pred_check_branch
    %17 = sbr.rel (0) target = $region13
  $region12: #{tpu_custom_call.1} parent=0 // pred_region
    _
  $region13: #{tpu_custom_call.1} parent=0 // pred_fallthru
    _
  // Predicated region
  $region14: #{tpu_custom_call.1} parent=0 // pred_check
    _
  $region15: #{tpu_custom_call.1} parent=0 // pred_check_branch
    %19 = sbr.rel (0) target = $region17
  $region16: #{tpu_custom_call.1} parent=0 // pred_region
    _
  $region17: #{tpu_custom_call.1} parent=0 // pred_fallthru
    _
  // Predicated region
  $region18: #{tpu_custom_call.1} parent=0 // pred_check
    _
  $region19: #{tpu_custom_call.1} parent=0 // pred_check_branch
    %21 = sbr.rel (0) target = $region21
  $region20: #{tpu_custom_call.1} parent=0 // pred_region
    _
  $region21: #{tpu_custom_call.1} parent=0 // pred_fallthru
    _
  // Predicated region
  $region22: #{tpu_custom_call.1} parent=0 // pred_check
    _
  $region23: #{tpu_custom_call.1} parent=0 // pred_check_branch
    %23 = sbr.rel (0) target = $region25
  $region24: #{tpu_custom_call.1} parent=0 // pred_region
    _
  $region25: #{tpu_custom_call.1} parent=0 // pred_fallthru
    _
  // Predicated region
  $region26: #{tpu_custom_call.1} parent=0 // pred_check
    _
  $region27: #{tpu_custom_call.1} parent=0 // pred_check_branch
    %25 = sbr.rel (0) target = $region29
  $region28: #{tpu_custom_call.1} parent=0 // pred_region
    _
  $region29: #{tpu_custom_call.1} parent=0 // pred_fallthru
    _
  %v26 = vld [vmem:[%s0] sm:$0xff]
  %v27 = vld [vmem:[%s1] sm:$0x1]
  %29 = vset.pattern.permute.xlu0 0
  %30 = vperm.xlu0 %29, %v26
  %v31 = vpop.permute.xlu0 %30
  %v33 = vlaneseq
  %v34 = vshrl.u32 %v33, 7
  %v35 = vsub.s32 0, %v34
  %v36 = vrot.slane %v27, %v35
  %v37 = vmul.f32 %v31, %v36
  %v38 = vld [vmem:[%s1 + $0x1] sm:$0x1]
  %39 = vset.pattern.permute.xlu0 1
  %40 = vperm.xlu0 %39, %v26
  %v41 = vpop.permute.xlu0 %40
  %v43 = vlaneseq
  %v44 = vshrl.u32 %v43, 7
  %v45 = vsub.s32 0, %v44
  %v46 = vrot.slane %v38, %v45
  %v47 = vmul.f32 %v41, %v46
  %v48 = vadd.f32 %v37, %v47
  %v49 = vld [vmem:[%s2] sm:$0x1]
  %v51 = vlaneseq
  %v52 = vshrl.u32 %v51, 7
  %v53 = vsub.s32 0, %v52
  %v54 = vrot.slane %v49, %v53
  %v56 = vadd.f32 %v48, %v54
  %v57 = vmax.f32 %v56, 0.0
  %v58 = vld [vmem:[%s3] sm:$0xff]
  %v59 = vld [vmem:[%s3 + $0x8] sm:$0xff]
  %v60 = vld [vmem:[%s3 + $0x10] sm:$0xff]
  %v61 = vld [vmem:[%s3 + $0x18] sm:$0xff]
  %v62 = vld [vmem:[%s3 + $0x20] sm:$0xff]
  %v63 = vld [vmem:[%s3 + $0x28] sm:$0xff]
  %v64 = vld [vmem:[%s3 + $0x30] sm:$0xff]
  %v65 = vld [vmem:[%s3 + $0x38] sm:$0xff]
  %v66 = vld [vmem:[%s4] sm:$0x1]
  %v68 = vlaneseq
  %v69 = vshrl.u32 %v68, 7
  %v70 = vsub.s32 0, %v69
  %v71 = vrot.slane %v66, %v70
  %vm73 = vcmask 523264
  %v75 = vsel %vm73, %v57, 0
  %77 = vmatprep.subr.mxu0 0.0
  %78 = vmatpush1.msra.mxu0 %v58
  %79 = vmatprep.subr.mxu0 0.0
  %80 = vmatpush1.msra.mxu0 %v59
  %81 = vmatprep.subr.mxu0 0.0
  %82 = vmatpush1.msra.mxu0 %v60
  %83 = vmatprep.subr.mxu0 0.0
  %84 = vmatpush1.msra.mxu0 %v61
  %85 = vmatprep.subr.mxu0 0.0
  %86 = vmatpush1.msra.mxu0 %v62
  %87 = vmatprep.subr.mxu0 0.0
  %88 = vmatpush1.msra.mxu0 %v63
  %89 = vmatprep.subr.mxu0 0.0
  %90 = vmatpush1.msra.mxu0 %v64
  %91 = vmatprep.subr.mxu0 0.0
  %92 = vmatpush1.msra.mxu0 %v65
  %93 = vmatprep.subr.mxu0 0.0
  %94 = vmatpush1.msra.mxu0 0.0
  %95 = vmatprep.subr.mxu0 0.0
  %96 = vmatpush1.msra.mxu0 0.0
  %97 = vmatprep.subr.mxu0 0.0
  %98 = vmatpush1.msra.mxu0 0.0
  %99 = vmatprep.subr.mxu0 0.0
  %100 = vmatpush1.msra.mxu0 0.0
  %101 = vmatprep.subr.mxu0 0.0
  %102 = vmatpush1.msra.mxu0 0.0
  %103 = vmatprep.subr.mxu0 0.0
  %104 = vmatpush1.msra.mxu0 0.0
  %105 = vmatprep.subr.mxu0 0.0
  %106 = vmatpush1.msra.mxu0 0.0
  %107 = vmatprep.subr.mxu0 0.0
  %108 = vmatpush1.msra.mxu0 0.0
  %109 = vmatprep.subr.mxu0 0.0
  %110 = vmatpush1.msra.mxu0 0.0
  %111 = vmatprep.subr.mxu0 0.0
  %112 = vmatpush1.msra.mxu0 0.0
  %113 = vmatprep.subr.mxu0 0.0
  %114 = vmatpush1.msra.mxu0 0.0
  %115 = vmatprep.subr.mxu0 0.0
  %116 = vmatpush1.msra.mxu0 0.0
  %117 = vmatprep.subr.mxu0 0.0
  %118 = vmatpush1.msra.mxu0 0.0
  %119 = vmatprep.subr.mxu0 0.0
  %120 = vmatpush1.msra.mxu0 0.0
  %121 = vmatprep.subr.mxu0 0.0
  %122 = vmatpush1.msra.mxu0 0.0
  %123 = vmatprep.subr.mxu0 0.0
  %124 = vmatpush1.msra.mxu0 0.0
  %125 = vmatprep.subr.mxu0 0.0
  %126 = vmatpush1.msra.mxu0 0.0
  %127 = vmatprep.subr.mxu0 0.0
  %128 = vmatpush1.msra.mxu0 0.0
  %129 = vmatprep.subr.mxu0 0.0
  %130 = vmatpush1.msra.mxu0 0.0
  %131 = vmatprep.subr.mxu0 0.0
  %132 = vmatpush1.msra.mxu0 0.0
  %133 = vmatprep.subr.mxu0 0.0
  %134 = vmatpush1.msra.mxu0 0.0
  %135 = vmatprep.subr.mxu0 0.0
  %136 = vmatpush1.msra.mxu0 0.0
  %137 = vmatprep.subr.mxu0 0.0
  %138 = vmatpush1.msra.mxu0 0.0
  %139 = vmatprep.subr.mxu0 0.0
  %140 = vmatpush1.msra.mxu0 0.0
  %141 = vmatprep.mubr.f32.mxu0 0.0
  %142 = vmatmul.mubr.f32.gmra.mrb[0].mxu0 %v75
  %v143 = vpop.f32.mrb[0].mxu0
  %v144 = vadd.f32 %v71, %v143
  %v145 = vpop.f32.mrb[0].mxu0
  %146 = vdwg.mxu0
  %v147 = vmax.f32 %v144, 0.0
  %v148 = vld [vmem:[%s5] sm:$0xff]
  %v149 = vld [vmem:[%s5 + $0x8] sm:$0xff]
  %v150 = vld [vmem:[%s5 + $0x10] sm:$0xff]
  %v151 = vld [vmem:[%s5 + $0x18] sm:$0xff]
  %v152 = vld [vmem:[%s5 + $0x20] sm:$0xff]
  %v153 = vld [vmem:[%s5 + $0x28] sm:$0xff]
  %v154 = vld [vmem:[%s5 + $0x30] sm:$0xff]
  %v155 = vld [vmem:[%s5 + $0x38] sm:$0xff]
  %v156 = vld [vmem:[%s6] sm:$0x1]
  %v158 = vlaneseq
  %v159 = vshrl.u32 %v158, 7
  %v160 = vsub.s32 0, %v159
  %v161 = vrot.slane %v156, %v160
  %v164 = vsel %vm73, %v147, 0
  %166 = vmatprep.subr.mxu0 0.0
  %167 = vmatpush1.msra.mxu0 %v148
  %168 = vmatprep.subr.mxu0 0.0
  %169 = vmatpush1.msra.mxu0 %v149
  %170 = vmatprep.subr.mxu0 0.0
  %171 = vmatpush1.msra.mxu0 %v150
  %172 = vmatprep.subr.mxu0 0.0
  %173 = vmatpush1.msra.mxu0 %v151
  %174 = vmatprep.subr.mxu0 0.0
  %175 = vmatpush1.msra.mxu0 %v152
  %176 = vmatprep.subr.mxu0 0.0
  %177 = vmatpush1.msra.mxu0 %v153
  %178 = vmatprep.subr.mxu0 0.0
  %179 = vmatpush1.msra.mxu0 %v154
  %180 = vmatprep.subr.mxu0 0.0
  %181 = vmatpush1.msra.mxu0 %v155
  %182 = vmatprep.subr.mxu0 0.0
  %183 = vmatpush1.msra.mxu0 0.0
  %184 = vmatprep.subr.mxu0 0.0
  %185 = vmatpush1.msra.mxu0 0.0
  %186 = vmatprep.subr.mxu0 0.0
  %187 = vmatpush1.msra.mxu0 0.0
  %188 = vmatprep.subr.mxu0 0.0
  %189 = vmatpush1.msra.mxu0 0.0
  %190 = vmatprep.subr.mxu0 0.0
  %191 = vmatpush1.msra.mxu0 0.0
  %192 = vmatprep.subr.mxu0 0.0
  %193 = vmatpush1.msra.mxu0 0.0
  %194 = vmatprep.subr.mxu0 0.0
  %195 = vmatpush1.msra.mxu0 0.0
  %196 = vmatprep.subr.mxu0 0.0
  %197 = vmatpush1.msra.mxu0 0.0
  %198 = vmatprep.subr.mxu0 0.0
  %199 = vmatpush1.msra.mxu0 0.0
  %200 = vmatprep.subr.mxu0 0.0
  %201 = vmatpush1.msra.mxu0 0.0
  %202 = vmatprep.subr.mxu0 0.0
  %203 = vmatpush1.msra.mxu0 0.0
  %204 = vmatprep.subr.mxu0 0.0
  %205 = vmatpush1.msra.mxu0 0.0
  %206 = vmatprep.subr.mxu0 0.0
  %207 = vmatpush1.msra.mxu0 0.0
  %208 = vmatprep.subr.mxu0 0.0
  %209 = vmatpush1.msra.mxu0 0.0
  %210 = vmatprep.subr.mxu0 0.0
  %211 = vmatpush1.msra.mxu0 0.0
  %212 = vmatprep.subr.mxu0 0.0
  %213 = vmatpush1.msra.mxu0 0.0
  %214 = vmatprep.subr.mxu0 0.0
  %215 = vmatpush1.msra.mxu0 0.0
  %216 = vmatprep.subr.mxu0 0.0
  %217 = vmatpush1.msra.mxu0 0.0
  %218 = vmatprep.subr.mxu0 0.0
  %219 = vmatpush1.msra.mxu0 0.0
  %220 = vmatprep.subr.mxu0 0.0
  %221 = vmatpush1.msra.mxu0 0.0
  %222 = vmatprep.subr.mxu0 0.0
  %223 = vmatpush1.msra.mxu0 0.0
  %224 = vmatprep.subr.mxu0 0.0
  %225 = vmatpush1.msra.mxu0 0.0
  %226 = vmatprep.subr.mxu0 0.0
  %227 = vmatpush1.msra.mxu0 0.0
  %228 = vmatprep.subr.mxu0 0.0
  %229 = vmatpush1.msra.mxu0 0.0
  %230 = vmatprep.mubr.f32.mxu0 0.0
  %231 = vmatmul.mubr.f32.gmra.mrb[0].mxu0 %v164
  %v232 = vpop.f32.mrb[0].mxu0
  %v233 = vadd.f32 %v161, %v232
  %v234 = vpop.f32.mrb[0].mxu0
  %235 = vdwg.mxu0
  %vm236 = vcmask 23552
  %237 = vst.msk [vmem:[%s7] sm:$0xff] %vm236, %v233
  // Predicated region
  $region30: #{tpu_custom_call.1} parent=0 // pred_check
    _
  $region31: #{tpu_custom_call.1} parent=0 // pred_check_branch
    %239 = sbr.rel (0) target = $region33
  $region32: #{tpu_custom_call.1} parent=0 // pred_region
    _
  $region33: #{tpu_custom_call.1} parent=0 // pred_fallthru
    _
  // Predicated region
  $region34: #{tpu_custom_call.1} parent=0 // pred_check
    _
  $region35: #{tpu_custom_call.1} parent=0 // pred_check_branch
    %241 = sbr.rel (0) target = $region37
  $region36: #{tpu_custom_call.1} parent=0 // pred_region
    _
  $region37: #{tpu_custom_call.1} parent=0 // pred_fallthru
    _

</llo_original>
